<compile_context>
chip_gen: v5e
topology: v5e:2x2
jax: 0.10.0
libtpu: 0.0.40
codegen_flags: <defaults>
</compile_context>

<pallas_src>
import functools

import jax
import jax.numpy as jnp
from jax.experimental import pallas as pl
from jax.experimental.pallas import tpu as pltpu


def _tv_partial_kernel(x_ref, hscale_ref, out_ref, *, inv_count_w):
    """Pre-scaled partial TV sum for one block of whole (H, W) planes."""
    x = x_ref[...].astype(jnp.float32)          # (R, W), R = planes_per_block * H
    r, w = x.shape

    # Neighbour values via cyclic roll (shift = extent-1  <=>  index+1 mod extent).
    # pltpu.roll goes through the XLU slot and avoids the relayout copies that
    # x[1:, :] / x[:, 1:] slices would trigger.
    x_next_row = pltpu.roll(x, r - 1, 0)        # row i -> x[(i+1) % R, :]
    x_next_col = pltpu.roll(x, w - 1, 1)        # col j -> x[:, (j+1) % W]
    dh = x_next_row - x
    dw = x_next_col - x

    # Per-row scale: 1/count_h on valid rows, 0 on the last row of each plane
    # (also kills the cyclic wrap pair).  Precomputed host-side so the hot
    # loop has no vector integer mod.
    hscale = hscale_ref[...]                    # (R, 1) f32
    # Per-lane scale: 1/count_w except the last (wrap) column.
    col = jax.lax.broadcasted_iota(jnp.int32, (r, w), 1)
    wscale = jnp.where(col < w - 1, jnp.float32(inv_count_w), jnp.float32(0.0))

    acc = dh * dh * hscale + dw * dw * wscale   # pure VALU, pre-scaled
    s = jnp.sum(acc)                            # one cross-lane reduce per (large) block
    out_ref[...] = jnp.full(out_ref.shape, s, dtype=out_ref.dtype)


def _pick_planes_per_block(num_planes, h, w, itemsize, target_bytes=2 << 20):
    """Largest divisor of num_planes whose block fits ~target_bytes and satisfies
    the Mosaic sublane constraint (block rows multiple of 8, or the full extent)."""
    plane_bytes = h * w * itemsize
    divisors = [d for d in range(1, num_planes + 1) if num_planes % d == 0]
    feasible = [d for d in divisors if (d * h) % 8 == 0 or d == num_planes]
    fitting = [d for d in feasible if d * plane_bytes <= target_bytes]
    if fitting:
        return max(fitting)
    # TODO(synk): for planes so large that even one plane exceeds VMEM, add
    # intra-plane row tiling with a 1-row halo for the H diff.
    return min(feasible)


def tv_loss(x, tv_loss_weight=1.0):
    """x: (B, C, H, W) array (NCHW). Returns the scalar TV loss (float32)."""
    B, C, H, W = x.shape
    if H < 2 or W < 2:
        raise ValueError("TVLoss requires H >= 2 and W >= 2 (the PyTorch "
                         "original divides by zero otherwise).")
    count_h = float(C * (H - 1) * W)
    count_w = float(C * H * (W - 1))
    inv_count_h = 1.0 / count_h
    inv_count_w = 1.0 / count_w

    bc = B * C
    itemsize = jnp.dtype(x.dtype).itemsize
    planes_per_block = _pick_planes_per_block(bc, H, W, itemsize)
    num_blocks = bc // planes_per_block
    block_rows = planes_per_block * H

    x2d = x.reshape(bc * H, W)

    # Row-scale column: 1/count_h on rows with a valid "next row" inside the
    # same plane, 0 on each plane's last row (masks plane-boundary + wrap pairs).
    row_in_plane = jnp.arange(bc * H, dtype=jnp.int32) % H
    hscale = jnp.where(row_in_plane != H - 1, inv_count_h, 0.0)
    hscale = hscale.astype(jnp.float32).reshape(bc * H, 1)

    kernel = functools.partial(_tv_partial_kernel, inv_count_w=inv_count_w)

    partials = pl.pallas_call(
        kernel,
        out_shape=jax.ShapeDtypeStruct((num_blocks, 1, 128), jnp.float32),
        grid_spec=pltpu.PrefetchScalarGridSpec(
            num_scalar_prefetch=0,
            grid=(num_blocks,),
            in_specs=[
                pl.BlockSpec((block_rows, W), lambda i: (i, 0)),
                pl.BlockSpec((block_rows, 1), lambda i: (i, 0)),
            ],
            out_specs=pl.BlockSpec((1, 1, 128), lambda i: (i, 0, 0)),
        ),
        compiler_params=pltpu.CompilerParams(
            dimension_semantics=("parallel",),       # independent partial sums
            vmem_limit_bytes=48 * 1024 * 1024,       # raise v5e/v6e scoped default, < v7x physical
        ),
    )(x2d, hscale)

    total = jnp.sum(partials[:, 0, 0])
    return (2.0 * float(tv_loss_weight) / float(B)) * total


def tv_loss_ref(x, tv_loss_weight=1.0):
    """Pure-JAX reference matching the PyTorch forward exactly."""
    B, C, H, W = x.shape
    count_h = C * (H - 1) * W
    count_w = C * H * (W - 1)
    h_tv = jnp.sum((x[:, :, 1:, :] - x[:, :, :-1, :]) ** 2)
    w_tv = jnp.sum((x[:, :, :, 1:] - x[:, :, :, :-1]) ** 2)
    return tv_loss_weight * 2.0 * (h_tv / count_h + w_tv / count_w) / B


if __name__ == "__main__":
    key = jax.random.PRNGKey(0)
    x = jax.random.normal(key, (2, 4, 16, 16), dtype=jnp.float32)

    loss = jax.block_until_ready(tv_loss(x, tv_loss_weight=1.0))
    ref = jax.block_until_ready(tv_loss_ref(x, tv_loss_weight=1.0))

    assert jnp.allclose(loss, ref, rtol=1e-5, atol=1e-5), (loss, ref)
    print("KERNEL_OK")
</pallas_src>

<mosaic_0001>
module attributes {stable_mosaic.version = 11 : i64} {
  func.func @_tv_partial_kernel(%arg0: i32, %arg1: memref<128x16xf32, #tpu.memory_space<vmem>>, %arg2: memref<128x1xf32, #tpu.memory_space<vmem>>, %arg3: memref<1x1x128xf32, #tpu.memory_space<vmem>>) attributes {dimension_semantics = [#tpu.dimension_semantics<parallel>], iteration_bounds = array<i64: 1>, scalar_prefetch = 0 : i64, scratch_operands = 0 : i64, tpu.core_type = #tpu.core_type<tc>, window_params = [{transform_indices = @transform_0, window_bounds = array<i64: 128, 16>}, {transform_indices = @transform_1, window_bounds = array<i64: 128, 1>}, {transform_indices = @transform_2, window_bounds = array<i64: 1, 1, 128>}]} {
    %c0 = arith.constant 0 : index
    %c0_0 = arith.constant 0 : index
    %0 = vector.load %arg1[%c0, %c0_0] : memref<128x16xf32, #tpu.memory_space<vmem>>, vector<128x16xf32>
    %c127_i32 = arith.constant 127 : i32
    %1 = tpu.dynamic_rotate %0 by %c127_i32 dim 0 : vector<128x16xf32>, i32 -> vector<128x16xf32>
    %c15_i32 = arith.constant 15 : i32
    %2 = tpu.dynamic_rotate %0 by %c15_i32 dim 1 : vector<128x16xf32>, i32 -> vector<128x16xf32>
    %3 = arith.subf %1, %0 : vector<128x16xf32>
    %4 = arith.subf %2, %0 : vector<128x16xf32>
    %c0_1 = arith.constant 0 : index
    %c0_2 = arith.constant 0 : index
    %5 = vector.load %arg2[%c0_1, %c0_2] : memref<128x1xf32, #tpu.memory_space<vmem>>, vector<128x1xf32>
    %6 = tpu.iota {dimensions = array<i32: 1>} : vector<128x16xi32>
    %c15_i32_3 = arith.constant 15 : i32
    %7 = vector.broadcast %c15_i32_3 : i32 to vector<128x16xi32>
    %8 = arith.cmpi slt, %6, %7 : vector<128x16xi32>
    %cst = arith.constant 0.00104166672 : f32
    %cst_4 = arith.constant 0.000000e+00 : f32
    %9 = vector.broadcast %cst : f32 to vector<128x16xf32>
    %10 = vector.broadcast %cst_4 : f32 to vector<128x16xf32>
    %11 = arith.select %8, %9, %10 : vector<128x16xi1>, vector<128x16xf32>
    %12 = arith.mulf %3, %3 : vector<128x16xf32>
    %13 = vector.broadcast %5 : vector<128x1xf32> to vector<128x16xf32>
    %14 = arith.mulf %12, %13 : vector<128x16xf32>
    %15 = arith.mulf %4, %4 : vector<128x16xf32>
    %16 = arith.mulf %15, %11 : vector<128x16xf32>
    %17 = arith.addf %14, %16 : vector<128x16xf32>
    %18 = vector.shape_cast %17 : vector<128x16xf32> to vector<1x128x16xf32>
    %cst_5 = arith.constant dense<0.000000e+00> : vector<1xf32>
    %19 = vector.multi_reduction <add>, %18, %cst_5 [1, 2] : vector<1x128x16xf32> to vector<1xf32>
    %20 = vector.shape_cast %19 : vector<1xf32> to vector<1x1x1xf32>
    %21 = vector.extract %20[0, 0, 0] : f32 from vector<1x1x1xf32>
    %22 = vector.broadcast %21 : f32 to vector<1x1x128xf32>
    %c0_6 = arith.constant 0 : index
    %c0_7 = arith.constant 0 : index
    %c0_8 = arith.constant 0 : index
    %23 = vector.load %arg3[%c0_6, %c0_7, %c0_8] : memref<1x1x128xf32, #tpu.memory_space<vmem>>, vector<1x1x128xf32>
    tpu.vector_store %arg3[%c0_6, %c0_7, %c0_8], %22 {strides = array<i32>} : memref<1x1x128xf32, #tpu.memory_space<vmem>>, vector<1x1x128xf32>,
    return
  }
  func.func @transform_0(%arg0: i32) -> (i32, i32) {
    %c0_i32 = arith.constant 0 : i32
    %c0_i32_0 = arith.constant 0 : i32
    return %arg0, %c0_i32 : i32, i32
  }
  func.func @transform_1(%arg0: i32) -> (i32, i32) {
    %c0_i32 = arith.constant 0 : i32
    %c0_i32_0 = arith.constant 0 : i32
    return %arg0, %c0_i32 : i32, i32
  }
  func.func @transform_2(%arg0: i32) -> (i32, i32, i32) {
    %c0_i32 = arith.constant 0 : i32
    %c0_i32_0 = arith.constant 0 : i32
    %c0_i32_1 = arith.constant 0 : i32
    return %arg0, %c0_i32, %c0_i32_0 : i32, i32, i32
  }
}

</mosaic_0001>

<llo_original>
// kernel: tpu_custom_call.1
$region0: #{tpu_custom_call.1}
  #allocation0 [shape = 'u32[]', space=smem, size = 0x4, offset = 0x4, fixed_abs, tag = 'smem constant byte address 0x4 - core index']
  #allocation1 [shape = 'u32[72,128]{1,0:T(1,128)}', space=vmem, size = 0x9000, scoped, tag = 'internal scratch']
  %s0 = inlined_call_operand.vmem [shape: f32[128,16], index: 0, kind: input, shape index: {}]
  %s1 = inlined_call_operand.vmem [shape: f32[128,1], index: 1, kind: input, shape index: {}]
  %s2 = inlined_call_operand.hbm [shape: f32[1,1,128], index: 2, kind: output, shape index: {}]
  %s3 = sld [smem:[#allocation0]]
  $region18: #{tpu_custom_call.1} parent=0
    _
  %s5 = ssub.s32 1, %s3
  %s6 = scalar_select 0, %s5, %s3
  $region1: #{tpu_custom_call.1} parent=0
    #allocation2 [shape = 'u8[512]{0}', space=vmem, size = 0x400, scoped, tag = 'output window, operand 0, single buffered']
    #allocation3 [shape = 's32[1]{0}', space=sflag, size = 0x4, scoped, tag = 'scoped memory for tpu_custom_call.1']
    %7 = vsyncpa [#allocation3], 0
    // Predicated region
    $region2: #{tpu_custom_call.1} parent=1 // pred_check
      _
    $region3: #{tpu_custom_call.1} parent=1 // pred_check_branch
      %9 = sbr.rel (0) target = $region5
    $region4: #{tpu_custom_call.1} parent=1 // pred_region
      _
    $region5: #{tpu_custom_call.1} parent=1 // pred_fallthru
      _
    // Predicated region
    $region6: #{tpu_custom_call.1} parent=1 // pred_check
      _
    $region7: #{tpu_custom_call.1} parent=1 // pred_check_branch
      %11 = sbr.rel (0) target = $region9
    $region8: #{tpu_custom_call.1} parent=1 // pred_region
      _
    $region9: #{tpu_custom_call.1} parent=1 // pred_fallthru
      _
    %v12 = vld [vmem:[%s0] sm:$0xff]
    %v13 = vld [vmem:[%s0 + $0x8] sm:$0xff]
    %v14 = vld [vmem:[%s0 + $0x10] sm:$0xff]
    %v15 = vld [vmem:[%s0 + $0x18] sm:$0xff]
    %v16 = vld [vmem:[%s0 + $0x20] sm:$0xff]
    %v17 = vld [vmem:[%s0 + $0x28] sm:$0xff]
    %v18 = vld [vmem:[%s0 + $0x30] sm:$0xff]
    %v19 = vld [vmem:[%s0 + $0x38] sm:$0xff]
    %v20 = vld [vmem:[%s0 + $0x40] sm:$0xff]
    %v21 = vld [vmem:[%s0 + $0x48] sm:$0xff]
    %v22 = vld [vmem:[%s0 + $0x50] sm:$0xff]
    %v23 = vld [vmem:[%s0 + $0x58] sm:$0xff]
    %v24 = vld [vmem:[%s0 + $0x60] sm:$0xff]
    %v25 = vld [vmem:[%s0 + $0x68] sm:$0xff]
    %v26 = vld [vmem:[%s0 + $0x70] sm:$0xff]
    %v27 = vld [vmem:[%s0 + $0x78] sm:$0xff]
    %v28 = vrot.slane %v12, 1
    %v29 = vrot.slane %v13, 1
    %v30 = vrot.slane %v14, 1
    %v31 = vrot.slane %v15, 1
    %v32 = vrot.slane %v16, 1
    %v33 = vrot.slane %v17, 1
    %v34 = vrot.slane %v18, 1
    %v35 = vrot.slane %v19, 1
    %v36 = vrot.slane %v20, 1
    %v37 = vrot.slane %v21, 1
    %v38 = vrot.slane %v22, 1
    %v39 = vrot.slane %v23, 1
    %v40 = vrot.slane %v24, 1
    %v41 = vrot.slane %v25, 1
    %v42 = vrot.slane %v26, 1
    %v43 = vrot.slane %v27, 1
    %v44 = vlaneseq
    %v45 = vshrl.u32 %v44, 7
    %vm46 = vcmp.lt.s32.totalorder %v45, 7
    %v47 = vsel %vm46, %v42, %v43
    %v48 = vsel %vm46, %v41, %v42
    %v49 = vsel %vm46, %v40, %v41
    %v50 = vsel %vm46, %v39, %v40
    %v51 = vsel %vm46, %v38, %v39
    %v52 = vsel %vm46, %v37, %v38
    %v53 = vsel %vm46, %v36, %v37
    %v54 = vsel %vm46, %v35, %v36
    %v55 = vsel %vm46, %v34, %v35
    %v56 = vsel %vm46, %v33, %v34
    %v57 = vsel %vm46, %v32, %v33
    %v58 = vsel %vm46, %v31, %v32
    %v59 = vsel %vm46, %v30, %v31
    %v60 = vsel %vm46, %v29, %v30
    %v61 = vsel %vm46, %v28, %v29
    %v62 = vsel %vm46, %v43, %v28
    %vm63 = vcmask 1047680
    %64 = vrot.lane.b32.xlu0 %v12, 16
    %v65 = vpop.permute.xlu0 %64
    %v66 = vsel %vm63, %v65, %v12
    %67 = vrot.lane.b32.xlu0 %v13, 16
    %v68 = vpop.permute.xlu0 %67
    %v69 = vsel %vm63, %v68, %v13
    %70 = vrot.lane.b32.xlu0 %v14, 16
    %v71 = vpop.permute.xlu0 %70
    %v72 = vsel %vm63, %v71, %v14
    %73 = vrot.lane.b32.xlu0 %v15, 16
    %v74 = vpop.permute.xlu0 %73
    %v75 = vsel %vm63, %v74, %v15
    %76 = vrot.lane.b32.xlu0 %v16, 16
    %v77 = vpop.permute.xlu0 %76
    %v78 = vsel %vm63, %v77, %v16
    %79 = vrot.lane.b32.xlu0 %v17, 16
    %v80 = vpop.permute.xlu0 %79
    %v81 = vsel %vm63, %v80, %v17
    %82 = vrot.lane.b32.xlu0 %v18, 16
    %v83 = vpop.permute.xlu0 %82
    %v84 = vsel %vm63, %v83, %v18
    %85 = vrot.lane.b32.xlu0 %v19, 16
    %v86 = vpop.permute.xlu0 %85
    %v87 = vsel %vm63, %v86, %v19
    %88 = vrot.lane.b32.xlu0 %v20, 16
    %v89 = vpop.permute.xlu0 %88
    %v90 = vsel %vm63, %v89, %v20
    %91 = vrot.lane.b32.xlu0 %v21, 16
    %v92 = vpop.permute.xlu0 %91
    %v93 = vsel %vm63, %v92, %v21
    %94 = vrot.lane.b32.xlu0 %v22, 16
    %v95 = vpop.permute.xlu0 %94
    %v96 = vsel %vm63, %v95, %v22
    %97 = vrot.lane.b32.xlu0 %v23, 16
    %v98 = vpop.permute.xlu0 %97
    %v99 = vsel %vm63, %v98, %v23
    %100 = vrot.lane.b32.xlu0 %v24, 16
    %v101 = vpop.permute.xlu0 %100
    %v102 = vsel %vm63, %v101, %v24
    %103 = vrot.lane.b32.xlu0 %v25, 16
    %v104 = vpop.permute.xlu0 %103
    %v105 = vsel %vm63, %v104, %v25
    %106 = vrot.lane.b32.xlu0 %v26, 16
    %v107 = vpop.permute.xlu0 %106
    %v108 = vsel %vm63, %v107, %v26
    %109 = vrot.lane.b32.xlu0 %v27, 16
    %v110 = vpop.permute.xlu0 %109
    %v111 = vsel %vm63, %v110, %v27
    %112 = vrot.lane.b32.xlu0 %v66, 16
    %v113 = vpop.permute.xlu0 %112
    %114 = vrot.lane.b32.xlu0 %v69, 16
    %v115 = vpop.permute.xlu0 %114
    %116 = vrot.lane.b32.xlu0 %v72, 16
    %v117 = vpop.permute.xlu0 %116
    %118 = vrot.lane.b32.xlu0 %v75, 16
    %v119 = vpop.permute.xlu0 %118
    %120 = vrot.lane.b32.xlu0 %v78, 16
    %v121 = vpop.permute.xlu0 %120
    %122 = vrot.lane.b32.xlu0 %v81, 16
    %v123 = vpop.permute.xlu0 %122
    %124 = vrot.lane.b32.xlu0 %v84, 16
    %v125 = vpop.permute.xlu0 %124
    %126 = vrot.lane.b32.xlu0 %v87, 16
    %v127 = vpop.permute.xlu0 %126
    %128 = vrot.lane.b32.xlu0 %v90, 16
    %v129 = vpop.permute.xlu0 %128
    %130 = vrot.lane.b32.xlu0 %v93, 16
    %v131 = vpop.permute.xlu0 %130
    %132 = vrot.lane.b32.xlu0 %v96, 16
    %v133 = vpop.permute.xlu0 %132
    %134 = vrot.lane.b32.xlu0 %v99, 16
    %v135 = vpop.permute.xlu0 %134
    %136 = vrot.lane.b32.xlu0 %v102, 16
    %v137 = vpop.permute.xlu0 %136
    %138 = vrot.lane.b32.xlu0 %v105, 16
    %v139 = vpop.permute.xlu0 %138
    %140 = vrot.lane.b32.xlu0 %v108, 16
    %v141 = vpop.permute.xlu0 %140
    %142 = vrot.lane.b32.xlu0 %v111, 16
    %v143 = vpop.permute.xlu0 %142
    %v144 = vsel %vm63, %v113, %v12
    %v145 = vsel %vm63, %v115, %v13
    %v146 = vsel %vm63, %v117, %v14
    %v147 = vsel %vm63, %v119, %v15
    %v148 = vsel %vm63, %v121, %v16
    %v149 = vsel %vm63, %v123, %v17
    %v150 = vsel %vm63, %v125, %v18
    %v151 = vsel %vm63, %v127, %v19
    %v152 = vsel %vm63, %v129, %v20
    %v153 = vsel %vm63, %v131, %v21
    %v154 = vsel %vm63, %v133, %v22
    %v155 = vsel %vm63, %v135, %v23
    %v156 = vsel %vm63, %v137, %v24
    %v157 = vsel %vm63, %v139, %v25
    %v158 = vsel %vm63, %v141, %v26
    %v159 = vsel %vm63, %v143, %v27
    %v160 = vsub.f32 %v61, %v12
    %v161 = vsub.f32 %v60, %v13
    %v162 = vsub.f32 %v59, %v14
    %v163 = vsub.f32 %v58, %v15
    %v164 = vsub.f32 %v57, %v16
    %v165 = vsub.f32 %v56, %v17
    %v166 = vsub.f32 %v55, %v18
    %v167 = vsub.f32 %v54, %v19
    %v168 = vsub.f32 %v53, %v20
    %v169 = vsub.f32 %v52, %v21
    %v170 = vsub.f32 %v51, %v22
    %v171 = vsub.f32 %v50, %v23
    %v172 = vsub.f32 %v49, %v24
    %v173 = vsub.f32 %v48, %v25
    %v174 = vsub.f32 %v47, %v26
    %v175 = vsub.f32 %v62, %v27
    %192 = vrot.lane.b32.xlu0 %v12, 1
    %v193 = vpop.permute.xlu0 %192
    %194 = vrot.lane.b32.xlu0 %v13, 1
    %v195 = vpop.permute.xlu0 %194
    %196 = vrot.lane.b32.xlu0 %v14, 1
    %v197 = vpop.permute.xlu0 %196
    %198 = vrot.lane.b32.xlu0 %v15, 1
    %v199 = vpop.permute.xlu0 %198
    %200 = vrot.lane.b32.xlu0 %v16, 1
    %v201 = vpop.permute.xlu0 %200
    %202 = vrot.lane.b32.xlu0 %v17, 1
    %v203 = vpop.permute.xlu0 %202
    %204 = vrot.lane.b32.xlu0 %v18, 1
    %v205 = vpop.permute.xlu0 %204
    %206 = vrot.lane.b32.xlu0 %v19, 1
    %v207 = vpop.permute.xlu0 %206
    %208 = vrot.lane.b32.xlu0 %v20, 1
    %v209 = vpop.permute.xlu0 %208
    %210 = vrot.lane.b32.xlu0 %v21, 1
    %v211 = vpop.permute.xlu0 %210
    %212 = vrot.lane.b32.xlu0 %v22, 1
    %v213 = vpop.permute.xlu0 %212
    %214 = vrot.lane.b32.xlu0 %v23, 1
    %v215 = vpop.permute.xlu0 %214
    %216 = vrot.lane.b32.xlu0 %v24, 1
    %v217 = vpop.permute.xlu0 %216
    %218 = vrot.lane.b32.xlu0 %v25, 1
    %v219 = vpop.permute.xlu0 %218
    %220 = vrot.lane.b32.xlu0 %v26, 1
    %v221 = vpop.permute.xlu0 %220
    %222 = vrot.lane.b32.xlu0 %v27, 1
    %v223 = vpop.permute.xlu0 %222
    %v240 = vsub.f32 %v144, %v193
    %v241 = vsub.f32 %v145, %v195
    %v242 = vsub.f32 %v146, %v197
    %v243 = vsub.f32 %v147, %v199
    %v244 = vsub.f32 %v148, %v201
    %v245 = vsub.f32 %v149, %v203
    %v246 = vsub.f32 %v150, %v205
    %v247 = vsub.f32 %v151, %v207
    %v248 = vsub.f32 %v152, %v209
    %v249 = vsub.f32 %v153, %v211
    %v250 = vsub.f32 %v154, %v213
    %v251 = vsub.f32 %v155, %v215
    %v252 = vsub.f32 %v156, %v217
    %v253 = vsub.f32 %v157, %v219
    %v254 = vsub.f32 %v158, %v221
    %v255 = vsub.f32 %v159, %v223
    %v256 = vld [vmem:[%s1] sm:$0xff]
    %v257 = vld [vmem:[%s1 + $0x8] sm:$0xff]
    %v258 = vld [vmem:[%s1 + $0x10] sm:$0xff]
    %v259 = vld [vmem:[%s1 + $0x18] sm:$0xff]
    %v260 = vld [vmem:[%s1 + $0x20] sm:$0xff]
    %v261 = vld [vmem:[%s1 + $0x28] sm:$0xff]
    %v262 = vld [vmem:[%s1 + $0x30] sm:$0xff]
    %v263 = vld [vmem:[%s1 + $0x38] sm:$0xff]
    %v264 = vld [vmem:[%s1 + $0x40] sm:$0xff]
    %v265 = vld [vmem:[%s1 + $0x48] sm:$0xff]
    %v266 = vld [vmem:[%s1 + $0x50] sm:$0xff]
    %v267 = vld [vmem:[%s1 + $0x58] sm:$0xff]
    %v268 = vld [vmem:[%s1 + $0x60] sm:$0xff]
    %v269 = vld [vmem:[%s1 + $0x68] sm:$0xff]
    %v270 = vld [vmem:[%s1 + $0x70] sm:$0xff]
    %v271 = vld [vmem:[%s1 + $0x78] sm:$0xff]
    %v272 = vlaneseq
    %v273 = vand.u32 %v272, 127
    %vm274 = vcmp.lt.s32.totalorder %v273, 15
    %v275 = vsel %vm274, 0.0010416667, 0.0
    %v276 = vmul.f32 %v160, %v160
    %v277 = vmul.f32 %v161, %v161
    %v278 = vmul.f32 %v162, %v162
    %v279 = vmul.f32 %v163, %v163
    %v280 = vmul.f32 %v164, %v164
    %v281 = vmul.f32 %v165, %v165
    %v282 = vmul.f32 %v166, %v166
    %v283 = vmul.f32 %v167, %v167
    %v284 = vmul.f32 %v168, %v168
    %v285 = vmul.f32 %v169, %v169
    %v286 = vmul.f32 %v170, %v170
    %v287 = vmul.f32 %v171, %v171
    %v288 = vmul.f32 %v172, %v172
    %v289 = vmul.f32 %v173, %v173
    %v290 = vmul.f32 %v174, %v174
    %v291 = vmul.f32 %v175, %v175
    %293 = vset.pattern.permute.xlu0 0
    %294 = vperm.xlu0 %293, %v256
    %v295 = vpop.permute.xlu0 %294
    %298 = vset.pattern.permute.xlu0 0
    %299 = vperm.xlu0 %298, %v257
    %v300 = vpop.permute.xlu0 %299
    %303 = vset.pattern.permute.xlu0 0
    %304 = vperm.xlu0 %303, %v258
    %v305 = vpop.permute.xlu0 %304
    %308 = vset.pattern.permute.xlu0 0
    %309 = vperm.xlu0 %308, %v259
    %v310 = vpop.permute.xlu0 %309
    %313 = vset.pattern.permute.xlu0 0
    %314 = vperm.xlu0 %313, %v260
    %v315 = vpop.permute.xlu0 %314
    %318 = vset.pattern.permute.xlu0 0
    %319 = vperm.xlu0 %318, %v261
    %v320 = vpop.permute.xlu0 %319
    %323 = vset.pattern.permute.xlu0 0
    %324 = vperm.xlu0 %323, %v262
    %v325 = vpop.permute.xlu0 %324
    %328 = vset.pattern.permute.xlu0 0
    %329 = vperm.xlu0 %328, %v263
    %v330 = vpop.permute.xlu0 %329
    %333 = vset.pattern.permute.xlu0 0
    %334 = vperm.xlu0 %333, %v264
    %v335 = vpop.permute.xlu0 %334
    %338 = vset.pattern.permute.xlu0 0
    %339 = vperm.xlu0 %338, %v265
    %v340 = vpop.permute.xlu0 %339
    %343 = vset.pattern.permute.xlu0 0
    %344 = vperm.xlu0 %343, %v266
    %v345 = vpop.permute.xlu0 %344
    %348 = vset.pattern.permute.xlu0 0
    %349 = vperm.xlu0 %348, %v267
    %v350 = vpop.permute.xlu0 %349
    %353 = vset.pattern.permute.xlu0 0
    %354 = vperm.xlu0 %353, %v268
    %v355 = vpop.permute.xlu0 %354
    %358 = vset.pattern.permute.xlu0 0
    %359 = vperm.xlu0 %358, %v269
    %v360 = vpop.permute.xlu0 %359
    %363 = vset.pattern.permute.xlu0 0
    %364 = vperm.xlu0 %363, %v270
    %v365 = vpop.permute.xlu0 %364
    %368 = vset.pattern.permute.xlu0 0
    %369 = vperm.xlu0 %368, %v271
    %v370 = vpop.permute.xlu0 %369
    %v372 = vmul.f32 %v276, %v295
    %v373 = vmul.f32 %v277, %v300
    %v374 = vmul.f32 %v278, %v305
    %v375 = vmul.f32 %v279, %v310
    %v376 = vmul.f32 %v280, %v315
    %v377 = vmul.f32 %v281, %v320
    %v378 = vmul.f32 %v282, %v325
    %v379 = vmul.f32 %v283, %v330
    %v380 = vmul.f32 %v284, %v335
    %v381 = vmul.f32 %v285, %v340
    %v382 = vmul.f32 %v286, %v345
    %v383 = vmul.f32 %v287, %v350
    %v384 = vmul.f32 %v288, %v355
    %v385 = vmul.f32 %v289, %v360
    %v386 = vmul.f32 %v290, %v365
    %v387 = vmul.f32 %v291, %v370
    %v388 = vmul.f32 %v240, %v240
    %v389 = vmul.f32 %v241, %v241
    %v390 = vmul.f32 %v242, %v242
    %v391 = vmul.f32 %v243, %v243
    %v392 = vmul.f32 %v244, %v244
    %v393 = vmul.f32 %v245, %v245
    %v394 = vmul.f32 %v246, %v246
    %v395 = vmul.f32 %v247, %v247
    %v396 = vmul.f32 %v248, %v248
    %v397 = vmul.f32 %v249, %v249
    %v398 = vmul.f32 %v250, %v250
    %v399 = vmul.f32 %v251, %v251
    %v400 = vmul.f32 %v252, %v252
    %v401 = vmul.f32 %v253, %v253
    %v402 = vmul.f32 %v254, %v254
    %v403 = vmul.f32 %v255, %v255
    %405 = vrot.lane.b32.xlu0 %v275, 1
    %v406 = vpop.permute.xlu0 %405
    %v408 = vmul.f32 %v388, %v406
    %v409 = vmul.f32 %v389, %v406
    %v410 = vmul.f32 %v390, %v406
    %v411 = vmul.f32 %v391, %v406
    %v412 = vmul.f32 %v392, %v406
    %v413 = vmul.f32 %v393, %v406
    %v414 = vmul.f32 %v394, %v406
    %v415 = vmul.f32 %v395, %v406
    %v416 = vmul.f32 %v396, %v406
    %v417 = vmul.f32 %v397, %v406
    %v418 = vmul.f32 %v398, %v406
    %v419 = vmul.f32 %v399, %v406
    %v420 = vmul.f32 %v400, %v406
    %v421 = vmul.f32 %v401, %v406
    %v422 = vmul.f32 %v402, %v406
    %v423 = vmul.f32 %v403, %v406
    %440 = vrot.lane.b32.xlu0 %v408, 127
    %v441 = vpop.permute.xlu0 %440
    %442 = vrot.lane.b32.xlu0 %v409, 127
    %v443 = vpop.permute.xlu0 %442
    %444 = vrot.lane.b32.xlu0 %v410, 127
    %v445 = vpop.permute.xlu0 %444
    %446 = vrot.lane.b32.xlu0 %v411, 127
    %v447 = vpop.permute.xlu0 %446
    %448 = vrot.lane.b32.xlu0 %v412, 127
    %v449 = vpop.permute.xlu0 %448
    %450 = vrot.lane.b32.xlu0 %v413, 127
    %v451 = vpop.permute.xlu0 %450
    %452 = vrot.lane.b32.xlu0 %v414, 127
    %v453 = vpop.permute.xlu0 %452
    %454 = vrot.lane.b32.xlu0 %v415, 127
    %v455 = vpop.permute.xlu0 %454
    %456 = vrot.lane.b32.xlu0 %v416, 127
    %v457 = vpop.permute.xlu0 %456
    %458 = vrot.lane.b32.xlu0 %v417, 127
    %v459 = vpop.permute.xlu0 %458
    %460 = vrot.lane.b32.xlu0 %v418, 127
    %v461 = vpop.permute.xlu0 %460
    %462 = vrot.lane.b32.xlu0 %v419, 127
    %v463 = vpop.permute.xlu0 %462
    %464 = vrot.lane.b32.xlu0 %v420, 127
    %v465 = vpop.permute.xlu0 %464
    %466 = vrot.lane.b32.xlu0 %v421, 127
    %v467 = vpop.permute.xlu0 %466
    %468 = vrot.lane.b32.xlu0 %v422, 127
    %v469 = vpop.permute.xlu0 %468
    %470 = vrot.lane.b32.xlu0 %v423, 127
    %v471 = vpop.permute.xlu0 %470
    %v488 = vadd.f32 %v372, %v441
    %v489 = vadd.f32 %v373, %v443
    %v490 = vadd.f32 %v374, %v445
    %v491 = vadd.f32 %v375, %v447
    %v492 = vadd.f32 %v376, %v449
    %v493 = vadd.f32 %v377, %v451
    %v494 = vadd.f32 %v378, %v453
    %v495 = vadd.f32 %v379, %v455
    %v496 = vadd.f32 %v380, %v457
    %v497 = vadd.f32 %v381, %v459
    %v498 = vadd.f32 %v382, %v461
    %v499 = vadd.f32 %v383, %v463
    %v500 = vadd.f32 %v384, %v465
    %v501 = vadd.f32 %v385, %v467
    %v502 = vadd.f32 %v386, %v469
    %v503 = vadd.f32 %v387, %v471
    %vm504 = vcmask 130048
    %v505 = vsel %vm504, %v488, 0.0
    %v506 = vsel %vm504, %v489, 0.0
    %v507 = vadd.f32 %v505, %v506
    %v508 = vsel %vm504, %v490, 0.0
    %v509 = vadd.f32 %v507, %v508
    %v510 = vsel %vm504, %v491, 0.0
    %v511 = vadd.f32 %v509, %v510
    %v512 = vsel %vm504, %v492, 0.0
    %v513 = vadd.f32 %v511, %v512
    %v514 = vsel %vm504, %v493, 0.0
    %v515 = vadd.f32 %v513, %v514
    %v516 = vsel %vm504, %v494, 0.0
    %v517 = vadd.f32 %v515, %v516
    %v518 = vsel %vm504, %v495, 0.0
    %v519 = vadd.f32 %v517, %v518
    %v520 = vsel %vm504, %v496, 0.0
    %v521 = vadd.f32 %v519, %v520
    %v522 = vsel %vm504, %v497, 0.0
    %v523 = vadd.f32 %v521, %v522
    %v524 = vsel %vm504, %v498, 0.0
    %v525 = vadd.f32 %v523, %v524
    %v526 = vsel %vm504, %v499, 0.0
    %v527 = vadd.f32 %v525, %v526
    %v528 = vsel %vm504, %v500, 0.0
    %v529 = vadd.f32 %v527, %v528
    %v530 = vsel %vm504, %v501, 0.0
    %v531 = vadd.f32 %v529, %v530
    %v532 = vsel %vm504, %v502, 0.0
    %v533 = vadd.f32 %v531, %v532
    %v534 = vsel %vm504, %v503, 0.0
    %v535 = vadd.f32 %v533, %v534
    %536 = vadd.xlane.f32.xlu0 %v535
    %v537 = vpop.xlane.xlu0 %536
    %v538 = vrot.slane %v537, 4
    %v539 = vadd.f32 %v537, %v538
    %v540 = vrot.slane %v539, 2
    %v541 = vadd.f32 %v539, %v540
    %v542 = vrot.slane %v541, 1
    %v543 = vadd.f32 %v541, %v542
    %s544 = vtos %v543
    %v545 = vstv %s544
    %546 = vst [vmem:[#allocation2] sm:$0x1] %v545
    // Predicated region
    $region10: #{tpu_custom_call.1} parent=1 // pred_check
      _
    $region11: #{tpu_custom_call.1} parent=1 // pred_check_branch
      %548 = sbr.rel (0) target = $region13
    $region12: #{tpu_custom_call.1} parent=1 // pred_region
      %550 = vsyncadd [#allocation3], 0
      %s552 = sshll.u32 [#allocation2], 4
      %s553 = int_to_ptr.vmem [resolvable:$true] %s552
      %s554 = sshll.u32 %s2, 4
      %s555 = int_to_ptr.hbm [resolvable:$true] %s554
      %557 = dma.vmem_to_hbm [thread:$0]  %s553, 16, %s555, [#allocation3]
    $region13: #{tpu_custom_call.1} parent=1 // pred_fallthru
      _
    // Predicated region
    $region14: #{tpu_custom_call.1} parent=1 // pred_check
      _
    $region15: #{tpu_custom_call.1} parent=1 // pred_check_branch
      %559 = sbr.rel (0) target = $region17
    $region16: #{tpu_custom_call.1} parent=1 // pred_region
      %561 = dma.done [#allocation3], 16
    $region17: #{tpu_custom_call.1} parent=1 // pred_fallthru
      _
    %562 = vsyncpa [#allocation3], 1

</llo_original>
